<compile_context>
chip_gen: v6e
topology: v6e:2x2x1
jax: 0.10.0
libtpu: 0.0.40
codegen_flags: <defaults>
</compile_context>

<pallas_src>
import functools
from typing import NamedTuple, Tuple, Any

import jax
import jax.numpy as jnp
from jax.experimental import pallas as pl
from jax.experimental.pallas import tpu as pltpu

_LANE = 128
_SUBLANE = 8


def _round_up(x, m):
    return ((x + m - 1) // m) * m


# -----------------------------------------------------------------------------
# Kernel body: fused Linear -> Tanh -> ... -> Linear over one batch tile.
# -----------------------------------------------------------------------------
def _ffnet_kernel(n_layers, *refs):
    """refs = (x_ref, w0, b0, ..., w_{L-1}, b_{L-1}, out_ref)."""
    x_ref = refs[0]
    out_ref = refs[-1]
    param_refs = refs[1:-1]

    h = x_ref[...]                                    # (block_m, in_size)
    for layer in range(n_layers):
        w = param_refs[2 * layer][...]                # (K, N), f32 or bf16
        b = param_refs[2 * layer + 1][...]            # (1, N), f32
        h_mx = h if h.dtype == w.dtype else h.astype(w.dtype)
        h = jnp.dot(h_mx, w, preferred_element_type=jnp.float32) + b  # f32 acc
        if layer < n_layers - 1:
            h = jnp.tanh(h)                           # EUP tanh, f32
    out_ref[...] = h.astype(out_ref.dtype)


# -----------------------------------------------------------------------------
# One-time parameter preparation (hoisted out of the per-call path).
# -----------------------------------------------------------------------------
class FFNetParams(NamedTuple):
    weights: Tuple[Any, ...]     # (K_i, N_i); final layer N zero-padded to 128
    biases: Tuple[Any, ...]      # (1, N_i) float32
    out_size: int                # true (unpadded) output feature count
    x_dtype: Any                 # dtype x is fed to the kernel in


def prepare_ffnet_params(weights, biases, *, use_bf16_matmul=None):
    """weights[i]: (in_i, out_i) (PyTorch nn.Linear weight, transposed).
    biases[i]: (out_i,) or (1, out_i). Zero-padding of the final output dim is
    numerically exact; the wrapper slices it off."""
    if use_bf16_matmul is None:
        use_bf16_matmul = True          # v5e/v6e/v7x MXUs are native bf16
    w_dtype = jnp.bfloat16 if use_bf16_matmul else jnp.float32

    n_layers = len(weights)
    out_size = int(weights[-1].shape[1])
    w_prep, b_prep = [], []
    for i, (w, b) in enumerate(zip(weights, biases)):
        w = jnp.asarray(w, jnp.float32)
        b = jnp.asarray(b, jnp.float32).reshape(1, -1)
        if i == n_layers - 1:
            n_pad = _round_up(w.shape[1], _LANE)
            if n_pad != w.shape[1]:
                w = jnp.pad(w, ((0, 0), (0, n_pad - w.shape[1])))
                b = jnp.pad(b, ((0, 0), (0, n_pad - b.shape[1])))
        w_prep.append(w.astype(w_dtype))
        b_prep.append(b)                # bias-add stays f32 in-kernel
    x_dtype = jnp.dtype(jnp.bfloat16 if use_bf16_matmul else jnp.float32)
    return FFNetParams(tuple(w_prep), tuple(b_prep), out_size, x_dtype)


# -----------------------------------------------------------------------------
# VMEM planning helpers.
# -----------------------------------------------------------------------------
def _physical_vmem_bytes():
    default = 64 << 20              # conservative: v7x per-core VMEM
    try:
        info = pltpu.get_tpu_info()
        cap = int(getattr(info, "vmem_capacity_bytes", 0))
        return cap if cap > 0 else default
    except Exception:
        return default


def _footprint_bytes(block_m, in_size, widths, out_pad, param_bytes,
                     x_itemsize, param_buffers):
    lane = lambda d: _round_up(max(int(d), 1), _LANE)   # VMEM lane-pads layouts
    x_buf = block_m * lane(in_size) * x_itemsize
    o_buf = block_m * out_pad * 4
    act = 2 * block_m * lane(max(widths)) * 4           # live h + f32 acc
    return param_buffers * param_bytes + 2 * (x_buf + o_buf) + act


# -----------------------------------------------------------------------------
# Forward wrapper.
# -----------------------------------------------------------------------------
_SINGLE_BUFFER_PARAMS_OK = None     # probed on first call: pl.Buffered(1) support


def ffnet_forward(x, params: FFNetParams, *, block_m=None):
    """Fused FFNet forward. x: (batch, in_size) -> (batch, out_size) float32."""
    global _SINGLE_BUFFER_PARAMS_OK

    weights, biases = params.weights, params.biases
    n_layers = len(weights)
    batch, in_size = x.shape
    assert in_size == weights[0].shape[0], "in_size mismatch"
    out_pad = int(weights[-1].shape[1])

    if x.dtype != params.x_dtype:
        # In a larger jit this cast fuses with x's producer; on the bf16 path it
        # halves x DMA into the kernel and the x double-buffer VMEM.
        x = x.astype(params.x_dtype)

    widths = [in_size] + [int(w.shape[1]) for w in weights]
    param_bytes = sum(int(a.size) * a.dtype.itemsize for a in weights + biases)
    x_itemsize = jnp.dtype(params.x_dtype).itemsize
    sub = 16 if x_itemsize < 4 else _SUBLANE   # bf16 sublane packing granularity

    vmem_phys = _physical_vmem_bytes()
    vmem_cap = int(0.75 * vmem_phys)           # ~48 MiB v7x, ~96 MiB v5e/v6e

    # ---- batch tile selection ----
    if block_m is None:
        max_rows = 1024 if vmem_phys >= (96 << 20) else 512
        block_m = min(max_rows, _round_up(batch, sub))
        # v7x-class parts (64 MiB VMEM) have 2 TensorCores: ensure grid >= 2 so
        # the "parallel" batch axis shards across both cores.
        if vmem_phys < (96 << 20) and batch >= 2 * sub:
            block_m = min(block_m, _round_up(pl.cdiv(batch, 2), sub))
        # Shrink until the (conservative, double-buffered-params) footprint fits.
        while block_m > sub and _footprint_bytes(
                block_m, in_size, widths, out_pad, param_bytes, x_itemsize, 2) > vmem_cap:
            block_m = max(sub, _round_up(block_m // 2, sub))
        if block_m >= batch:
            block_m = batch if batch % sub == 0 or batch <= sub else block_m
    block_m = max(1, int(block_m))
    if block_m != batch:
        block_m = max(sub, _round_up(block_m, sub))
    grid_m = pl.cdiv(batch, block_m)
    # TODO(synk): if the resident parameters alone exceed vmem_cap (very wide nets
    # on v7x), stream weights with pltpu.emit_pipeline / tile the widest layer's N
    # instead of keeping every layer VMEM-resident.

    # ---- cost hint for XLA scheduling ----
    flops = 2 * batch * sum(int(w.shape[0]) * int(w.shape[1]) for w in weights)
    transcendentals = batch * sum(int(w.shape[1]) for w in weights[:-1])
    bytes_accessed = int(x.size) * x_itemsize + batch * out_pad * 4 + param_bytes
    cost = pl.CostEstimate(flops=int(flops), transcendentals=int(transcendentals),
                           bytes_accessed=int(bytes_accessed))

    kernel = functools.partial(_ffnet_kernel, n_layers)
    out_shape = jax.ShapeDtypeStruct((batch, out_pad), jnp.float32)

    def launch(single_buffer_params):
        param_spec_kwargs = {}
        if single_buffer_params:
            # Constant index_map -> params stay VMEM-resident across the grid;
            # double-buffering them would just double the footprint.
            param_spec_kwargs = dict(pipeline_mode=pl.Buffered(1))

        in_specs = [pl.BlockSpec((block_m, in_size), lambda i: (i, 0))]
        operands = [x]
        for w, b in zip(weights, biases):
            in_specs.append(pl.BlockSpec(w.shape, lambda i: (0, 0), **param_spec_kwargs))
            in_specs.append(pl.BlockSpec(b.shape, lambda i: (0, 0), **param_spec_kwargs))
            operands.append(w)
            operands.append(b)
        out_spec = pl.BlockSpec((block_m, out_pad), lambda i: (i, 0))

        fp = _footprint_bytes(block_m, in_size, widths, out_pad, param_bytes,
                              x_itemsize, 1 if single_buffer_params else 2)
        vmem_limit = min(vmem_cap, max(16 << 20, int(1.25 * fp) + (2 << 20)))

        return pl.pallas_call(
            kernel,
            out_shape=out_shape,
            grid=(grid_m,),
            in_specs=in_specs,
            out_specs=out_spec,
            compiler_params=pltpu.CompilerParams(
                dimension_semantics=("parallel",),
                vmem_limit_bytes=vmem_limit,
            ),
            cost_estimate=cost,
        )(*operands)

    # One-time probe: prefer single-buffered resident params, fall back cleanly.
    if _SINGLE_BUFFER_PARAMS_OK is None:
        if hasattr(pl, "Buffered"):
            try:
                out_p = jax.block_until_ready(launch(True))
                _SINGLE_BUFFER_PARAMS_OK = True
            except Exception:
                _SINGLE_BUFFER_PARAMS_OK = False
                out_p = launch(False)
        else:
            _SINGLE_BUFFER_PARAMS_OK = False
            out_p = launch(False)
    else:
        out_p = launch(_SINGLE_BUFFER_PARAMS_OK)

    return out_p[:, :params.out_size]


# -----------------------------------------------------------------------------
# Init + pure-JAX reference.
# -----------------------------------------------------------------------------
def init_ffnet_params(key, in_size, out_size, hidden_size):
    """PyTorch nn.Linear default init: U(-1/sqrt(fan_in), 1/sqrt(fan_in)),
    weights stored in (in, out) layout."""
    dims = [in_size] + list(hidden_size) + [out_size]
    weights, biases = [], []
    for i in range(len(dims) - 1):
        fan_in, fan_out = dims[i], dims[i + 1]
        bound = 1.0 / (fan_in ** 0.5)
        key, kw, kb = jax.random.split(key, 3)
        weights.append(
            jax.random.uniform(kw, (fan_in, fan_out), jnp.float32, -bound, bound))
        biases.append(
            jax.random.uniform(kb, (1, fan_out), jnp.float32, -bound, bound))
    return weights, biases


def ffnet_reference(x, weights, biases):
    h = x
    for i, (w, b) in enumerate(zip(weights, biases)):
        h = h @ w + b.reshape(1, -1)
        if i < len(weights) - 1:
            h = jnp.tanh(h)
    return h


if __name__ == "__main__":
    key = jax.random.PRNGKey(0)

    # FFNet(in_size=16, out_size=4, hidden_size=[32, 32]), batch=8
    batch, in_size, hidden_size, out_size = 8, 16, [32, 32], 4
    key, kx = jax.random.split(key)
    x = jax.random.normal(kx, (batch, in_size), jnp.float32)
    weights, biases = init_ffnet_params(key, in_size, out_size, hidden_size)
    ref = ffnet_reference(x, weights, biases)

    # Exact f32 path (params prepared ONCE, reused across calls).
    params_f32 = prepare_ffnet_params(weights, biases, use_bf16_matmul=False)
    out = jax.block_until_ready(ffnet_forward(x, params_f32))
    assert out.shape == (batch, out_size)
    assert jnp.allclose(out, ref, atol=1e-5, rtol=1e-5), "mismatch vs reference (small)"

    # Larger batch with explicit tile -> grid > 1 and a ragged last block.
    batch2 = 1000
    key, kx2 = jax.random.split(key)
    x2 = jax.random.normal(kx2, (batch2, in_size), jnp.float32)
    ref2 = ffnet_reference(x2, weights, biases)
    out2 = jax.block_until_ready(ffnet_forward(x2, params_f32, block_m=256))
    assert out2.shape == (batch2, out_size)
    assert jnp.allclose(out2, ref2, atol=1e-5, rtol=1e-5), "mismatch vs reference (tiled)"

    # Default path: bf16 MXU operands (f32 accumulate/bias/tanh), auto block_m.
    params_bf16 = prepare_ffnet_params(weights, biases)
    out3 = jax.block_until_ready(ffnet_forward(x2, params_bf16))
    assert out3.shape == (batch2, out_size)
    assert jnp.allclose(out3, ref2, atol=2e-2, rtol=2e-2), "mismatch vs reference (bf16)"

    # TODO(synk): use_batch_norm=True path (nn.BatchNorm1d running stats) not
    # implemented; the module default is use_batch_norm=False, which this kernel
    # reproduces.
    print("KERNEL_OK")
</pallas_src>

<mosaic_0001>
module attributes {stable_mosaic.version = 11 : i64} {
  func.func @_ffnet_kernel(%arg0: i32, %arg1: memref<8x16xf32, #tpu.memory_space<vmem>>, %arg2: memref<16x32xf32, #tpu.memory_space<vmem>>, %arg3: memref<1x32xf32, #tpu.memory_space<vmem>>, %arg4: memref<32x32xf32, #tpu.memory_space<vmem>>, %arg5: memref<1x32xf32, #tpu.memory_space<vmem>>, %arg6: memref<32x128xf32, #tpu.memory_space<vmem>>, %arg7: memref<1x128xf32, #tpu.memory_space<vmem>>, %arg8: memref<8x128xf32, #tpu.memory_space<vmem>>) attributes {dimension_semantics = [#tpu.dimension_semantics<parallel>], iteration_bounds = array<i64: 1>, scalar_prefetch = 0 : i64, scratch_operands = 0 : i64, tpu.core_type = #tpu.core_type<tc>, window_params = [{transform_indices = @transform_0, window_bounds = array<i64: 8, 16>}, {pipeline_mode = #tpu.pipeline_mode<synchronous>, transform_indices = @transform_1, window_bounds = array<i64: 16, 32>}, {pipeline_mode = #tpu.pipeline_mode<synchronous>, transform_indices = @transform_2, window_bounds = array<i64: 1, 32>}, {pipeline_mode = #tpu.pipeline_mode<synchronous>, transform_indices = @transform_3, window_bounds = array<i64: 32, 32>}, {pipeline_mode = #tpu.pipeline_mode<synchronous>, transform_indices = @transform_4, window_bounds = array<i64: 1, 32>}, {pipeline_mode = #tpu.pipeline_mode<synchronous>, transform_indices = @transform_5, window_bounds = array<i64: 32, 128>}, {pipeline_mode = #tpu.pipeline_mode<synchronous>, transform_indices = @transform_6, window_bounds = array<i64: 1, 128>}, {transform_indices = @transform_7, window_bounds = array<i64: 8, 128>}]} {
    %c0 = arith.constant 0 : index
    %c0_0 = arith.constant 0 : index
    %0 = vector.load %arg1[%c0, %c0_0] : memref<8x16xf32, #tpu.memory_space<vmem>>, vector<8x16xf32>
    %c0_1 = arith.constant 0 : index
    %c0_2 = arith.constant 0 : index
    %1 = vector.load %arg2[%c0_1, %c0_2] : memref<16x32xf32, #tpu.memory_space<vmem>>, vector<16x32xf32>
    %c0_3 = arith.constant 0 : index
    %c0_4 = arith.constant 0 : index
    %2 = vector.load %arg3[%c0_3, %c0_4] : memref<1x32xf32, #tpu.memory_space<vmem>>, vector<1x32xf32>
    %cst = arith.constant dense<0.000000e+00> : vector<8x32xf32>
    %3 = tpu.matmul %0, %1, %cst {dimension_numbers = #tpu.dot_dimension_numbers<[1], [0], [0], [1], [0, 0, 1, 1], [], []>} : vector<8x16xf32>, vector<16x32xf32>, vector<8x32xf32> -> vector<8x32xf32>
    %4 = vector.broadcast %2 : vector<1x32xf32> to vector<8x32xf32>
    %5 = arith.addf %3, %4 : vector<8x32xf32>
    %6 = math.tanh %5 : vector<8x32xf32>
    %c0_5 = arith.constant 0 : index
    %c0_6 = arith.constant 0 : index
    %7 = vector.load %arg4[%c0_5, %c0_6] : memref<32x32xf32, #tpu.memory_space<vmem>>, vector<32x32xf32>
    %c0_7 = arith.constant 0 : index
    %c0_8 = arith.constant 0 : index
    %8 = vector.load %arg5[%c0_7, %c0_8] : memref<1x32xf32, #tpu.memory_space<vmem>>, vector<1x32xf32>
    %cst_9 = arith.constant dense<0.000000e+00> : vector<8x32xf32>
    %9 = tpu.matmul %6, %7, %cst_9 {dimension_numbers = #tpu.dot_dimension_numbers<[1], [0], [0], [1], [0, 0, 1, 1], [], []>} : vector<8x32xf32>, vector<32x32xf32>, vector<8x32xf32> -> vector<8x32xf32>
    %10 = vector.broadcast %8 : vector<1x32xf32> to vector<8x32xf32>
    %11 = arith.addf %9, %10 : vector<8x32xf32>
    %12 = math.tanh %11 : vector<8x32xf32>
    %c0_10 = arith.constant 0 : index
    %c0_11 = arith.constant 0 : index
    %13 = vector.load %arg6[%c0_10, %c0_11] : memref<32x128xf32, #tpu.memory_space<vmem>>, vector<32x128xf32>
    %c0_12 = arith.constant 0 : index
    %c0_13 = arith.constant 0 : index
    %14 = vector.load %arg7[%c0_12, %c0_13] : memref<1x128xf32, #tpu.memory_space<vmem>>, vector<1x128xf32>
    %cst_14 = arith.constant dense<0.000000e+00> : vector<8x128xf32>
    %15 = tpu.matmul %12, %13, %cst_14 {dimension_numbers = #tpu.dot_dimension_numbers<[1], [0], [0], [1], [0, 0, 1, 1], [], []>} : vector<8x32xf32>, vector<32x128xf32>, vector<8x128xf32> -> vector<8x128xf32>
    %16 = vector.broadcast %14 : vector<1x128xf32> to vector<8x128xf32>
    %17 = arith.addf %15, %16 : vector<8x128xf32>
    %c0_15 = arith.constant 0 : index
    %c0_16 = arith.constant 0 : index
    %18 = vector.load %arg8[%c0_15, %c0_16] : memref<8x128xf32, #tpu.memory_space<vmem>>, vector<8x128xf32>
    tpu.vector_store %arg8[%c0_15, %c0_16], %17 {strides = array<i32>} : memref<8x128xf32, #tpu.memory_space<vmem>>, vector<8x128xf32>,
    return
  }
  func.func @transform_0(%arg0: i32) -> (i32, i32) {
    %c0_i32 = arith.constant 0 : i32
    %c0_i32_0 = arith.constant 0 : i32
    return %arg0, %c0_i32 : i32, i32
  }
  func.func @transform_1(%arg0: i32) -> (i32, i32) {
    %c0_i32 = arith.constant 0 : i32
    %c0_i32_0 = arith.constant 0 : i32
    %c0_i32_1 = arith.constant 0 : i32
    return %c0_i32, %c0_i32_0 : i32, i32
  }
  func.func @transform_2(%arg0: i32) -> (i32, i32) {
    %c0_i32 = arith.constant 0 : i32
    %c0_i32_0 = arith.constant 0 : i32
    %c0_i32_1 = arith.constant 0 : i32
    return %c0_i32, %c0_i32_0 : i32, i32
  }
  func.func @transform_3(%arg0: i32) -> (i32, i32) {
    %c0_i32 = arith.constant 0 : i32
    %c0_i32_0 = arith.constant 0 : i32
    %c0_i32_1 = arith.constant 0 : i32
    return %c0_i32, %c0_i32_0 : i32, i32
  }
  func.func @transform_4(%arg0: i32) -> (i32, i32) {
    %c0_i32 = arith.constant 0 : i32
    %c0_i32_0 = arith.constant 0 : i32
    %c0_i32_1 = arith.constant 0 : i32
    return %c0_i32, %c0_i32_0 : i32, i32
  }
  func.func @transform_5(%arg0: i32) -> (i32, i32) {
    %c0_i32 = arith.constant 0 : i32
    %c0_i32_0 = arith.constant 0 : i32
    %c0_i32_1 = arith.constant 0 : i32
    return %c0_i32, %c0_i32_0 : i32, i32
  }
  func.func @transform_6(%arg0: i32) -> (i32, i32) {
    %c0_i32 = arith.constant 0 : i32
    %c0_i32_0 = arith.constant 0 : i32
    %c0_i32_1 = arith.constant 0 : i32
    return %c0_i32, %c0_i32_0 : i32, i32
  }
  func.func @transform_7(%arg0: i32) -> (i32, i32) {
    %c0_i32 = arith.constant 0 : i32
    %c0_i32_0 = arith.constant 0 : i32
    return %arg0, %c0_i32 : i32, i32
  }
}

module attributes {stable_mosaic.version = 11 : i64} {
  func.func @_ffnet_kernel(%arg0: i32, %arg1: memref<8x16xf32, #tpu.memory_space<vmem>>, %arg2: memref<16x32xf32, #tpu.memory_space<vmem>>, %arg3: memref<1x32xf32, #tpu.memory_space<vmem>>, %arg4: memref<32x32xf32, #tpu.memory_space<vmem>>, %arg5: memref<1x32xf32, #tpu.memory_space<vmem>>, %arg6: memref<32x128xf32, #tpu.memory_space<vmem>>, %arg7: memref<1x128xf32, #tpu.memory_space<vmem>>, %arg8: memref<8x128xf32, #tpu.memory_space<vmem>>) attributes {dimension_semantics = [#tpu.dimension_semantics<parallel>], iteration_bounds = array<i64: 1>, scalar_prefetch = 0 : i64, scratch_operands = 0 : i64, tpu.core_type = #tpu.core_type<tc>, window_params = [{transform_indices = @transform_0, window_bounds = array<i64: 8, 16>}, {pipeline_mode = #tpu.pipeline_mode<synchronous>, transform_indices = @transform_1, window_bounds = array<i64: 16, 32>}, {pipeline_mode = #tpu.pipeline_mode<synchronous>, transform_indices = @transform_2, window_bounds = array<i64: 1, 32>}, {pipeline_mode = #tpu.pipeline_mode<synchronous>, transform_indices = @transform_3, window_bounds = array<i64: 32, 32>}, {pipeline_mode = #tpu.pipeline_mode<synchronous>, transform_indices = @transform_4, window_bounds = array<i64: 1, 32>}, {pipeline_mode = #tpu.pipeline_mode<synchronous>, transform_indices = @transform_5, window_bounds = array<i64: 32, 128>}, {pipeline_mode = #tpu.pipeline_mode<synchronous>, transform_indices = @transform_6, window_bounds = array<i64: 1, 128>}, {transform_indices = @transform_7, window_bounds = array<i64: 8, 128>}]} {
    %c0 = arith.constant 0 : index
    %c0_0 = arith.constant 0 : index
    %0 = vector.load %arg1[%c0, %c0_0] : memref<8x16xf32, #tpu.memory_space<vmem>>, vector<8x16xf32>
    %c0_1 = arith.constant 0 : index
    %c0_2 = arith.constant 0 : index
    %1 = vector.load %arg2[%c0_1, %c0_2] : memref<16x32xf32, #tpu.memory_space<vmem>>, vector<16x32xf32>
    %c0_3 = arith.constant 0 : index
    %c0_4 = arith.constant 0 : index
    %2 = vector.load %arg3[%c0_3, %c0_4] : memref<1x32xf32, #tpu.memory_space<vmem>>, vector<1x32xf32>
    %cst = arith.constant dense<0.000000e+00> : vector<8x32xf32>
    %3 = tpu.matmul %0, %1, %cst {dimension_numbers = #tpu.dot_dimension_numbers<[1], [0], [0], [1], [0, 0, 1, 1], [], []>} : vector<8x16xf32>, vector<16x32xf32>, vector<8x32xf32> -> vector<8x32xf32>
    %4 = vector.broadcast %2 : vector<1x32xf32> to vector<8x32xf32>
    %5 = arith.addf %3, %4 : vector<8x32xf32>
    %6 = math.tanh %5 : vector<8x32xf32>
    %c0_5 = arith.constant 0 : index
    %c0_6 = arith.constant 0 : index
    %7 = vector.load %arg4[%c0_5, %c0_6] : memref<32x32xf32, #tpu.memory_space<vmem>>, vector<32x32xf32>
    %c0_7 = arith.constant 0 : index
    %c0_8 = arith.constant 0 : index
    %8 = vector.load %arg5[%c0_7, %c0_8] : memref<1x32xf32, #tpu.memory_space<vmem>>, vector<1x32xf32>
    %cst_9 = arith.constant dense<0.000000e+00> : vector<8x32xf32>
    %9 = tpu.matmul %6, %7, %cst_9 {dimension_numbers = #tpu.dot_dimension_numbers<[1], [0], [0], [1], [0, 0, 1, 1], [], []>} : vector<8x32xf32>, vector<32x32xf32>, vector<8x32xf32> -> vector<8x32xf32>
    %10 = vector.broadcast %8 : vector<1x32xf32> to vector<8x32xf32>
    %11 = arith.addf %9, %10 : vector<8x32xf32>
    %12 = math.tanh %11 : vector<8x32xf32>
    %c0_10 = arith.constant 0 : index
    %c0_11 = arith.constant 0 : index
    %13 = vector.load %arg6[%c0_10, %c0_11] : memref<32x128xf32, #tpu.memory_space<vmem>>, vector<32x128xf32>
    %c0_12 = arith.constant 0 : index
    %c0_13 = arith.constant 0 : index
    %14 = vector.load %arg7[%c0_12, %c0_13] : memref<1x128xf32, #tpu.memory_space<vmem>>, vector<1x128xf32>
    %cst_14 = arith.constant dense<0.000000e+00> : vector<8x128xf32>
    %15 = tpu.matmul %12, %13, %cst_14 {dimension_numbers = #tpu.dot_dimension_numbers<[1], [0], [0], [1], [0, 0, 1, 1], [], []>} : vector<8x32xf32>, vector<32x128xf32>, vector<8x128xf32> -> vector<8x128xf32>
    %16 = vector.broadcast %14 : vector<1x128xf32> to vector<8x128xf32>
    %17 = arith.addf %15, %16 : vector<8x128xf32>
    %c0_15 = arith.constant 0 : index
    %c0_16 = arith.constant 0 : index
    %18 = vector.load %arg8[%c0_15, %c0_16] : memref<8x128xf32, #tpu.memory_space<vmem>>, vector<8x128xf32>
    tpu.vector_store %arg8[%c0_15, %c0_16], %17 {strides = array<i32>} : memref<8x128xf32, #tpu.memory_space<vmem>>, vector<8x128xf32>,
    return
  }
  func.func @transform_0(%arg0: i32) -> (i32, i32) {
    %c0_i32 = arith.constant 0 : i32
    %c0_i32_0 = arith.constant 0 : i32
    return %arg0, %c0_i32 : i32, i32
  }
  func.func @transform_1(%arg0: i32) -> (i32, i32) {
    %c0_i32 = arith.constant 0 : i32
    %c0_i32_0 = arith.constant 0 : i32
    %c0_i32_1 = arith.constant 0 : i32
    return %c0_i32, %c0_i32_0 : i32, i32
  }
  func.func @transform_2(%arg0: i32) -> (i32, i32) {
    %c0_i32 = arith.constant 0 : i32
    %c0_i32_0 = arith.constant 0 : i32
    %c0_i32_1 = arith.constant 0 : i32
    return %c0_i32, %c0_i32_0 : i32, i32
  }
  func.func @transform_3(%arg0: i32) -> (i32, i32) {
    %c0_i32 = arith.constant 0 : i32
    %c0_i32_0 = arith.constant 0 : i32
    %c0_i32_1 = arith.constant 0 : i32
    return %c0_i32, %c0_i32_0 : i32, i32
  }
  func.func @transform_4(%arg0: i32) -> (i32, i32) {
    %c0_i32 = arith.constant 0 : i32
    %c0_i32_0 = arith.constant 0 : i32
    %c0_i32_1 = arith.constant 0 : i32
    return %c0_i32, %c0_i32_0 : i32, i32
  }
  func.func @transform_5(%arg0: i32) -> (i32, i32) {
    %c0_i32 = arith.constant 0 : i32
    %c0_i32_0 = arith.constant 0 : i32
    %c0_i32_1 = arith.constant 0 : i32
    return %c0_i32, %c0_i32_0 : i32, i32
  }
  func.func @transform_6(%arg0: i32) -> (i32, i32) {
    %c0_i32 = arith.constant 0 : i32
    %c0_i32_0 = arith.constant 0 : i32
    %c0_i32_1 = arith.constant 0 : i32
    return %c0_i32, %c0_i32_0 : i32, i32
  }
  func.func @transform_7(%arg0: i32) -> (i32, i32) {
    %c0_i32 = arith.constant 0 : i32
    %c0_i32_0 = arith.constant 0 : i32
    return %arg0, %c0_i32 : i32, i32
  }
}

</mosaic_0001>

<llo_original>
// kernel: tpu_custom_call.1
$region0: #{tpu_custom_call.1}
  #allocation0 [shape = 'u32[]', space=smem, size = 0x4, offset = 0x4, fixed_abs, tag = 'smem constant byte address 0x4 - core index']
  #allocation1 [shape = 'u32[144,128]{1,0:T(1,128)}', space=vmem, size = 0x12000, scoped, tag = 'internal scratch']
  %s0 = inlined_call_operand.hbm [shape: f32[8,16], index: 0, kind: input, shape index: {}]
  %s1 = inlined_call_operand.hbm [shape: f32[16,32], index: 1, kind: input, shape index: {}]
  %s2 = inlined_call_operand.vmem [shape: f32[1,32], index: 2, kind: input, shape index: {}]
  %s3 = inlined_call_operand.hbm [shape: f32[32,32], index: 3, kind: input, shape index: {}]
  %s4 = inlined_call_operand.vmem [shape: f32[1,32], index: 4, kind: input, shape index: {}]
  %s5 = inlined_call_operand.hbm [shape: f32[32,128], index: 5, kind: input, shape index: {}]
  %s6 = inlined_call_operand.vmem [shape: f32[1,128], index: 6, kind: input, shape index: {}]
  %s7 = inlined_call_operand.hbm [shape: f32[8,128], index: 7, kind: output, shape index: {}]
  %s8 = sld [smem:[#allocation0]]
  $region54: #{tpu_custom_call.1} parent=0
    _
  %s10 = ssub.s32 1, %s8
  %s11 = scalar_select 0, %s10, %s8
  $region1: #{tpu_custom_call.1} parent=0
    #allocation2 [shape = 'u8[4096]{0}', space=vmem, size = 0x1000, scoped, tag = 'input window, operand 0, single buffered']
    #allocation3 [shape = 's32[1]{0}', space=sflag, size = 0x4, scoped, tag = 'scoped memory for tpu_custom_call.1']
    #allocation4 [shape = 's32[1]{0}', space=sflag, size = 0x4, scoped, tag = 'scoped memory for tpu_custom_call.1']
    #allocation5 [shape = 'u8[8192]{0}', space=vmem, size = 0x2000, scoped, tag = 'input window, operand 1, single buffered']
    #allocation6 [shape = 's32[1]{0}', space=sflag, size = 0x4, scoped, tag = 'scoped memory for tpu_custom_call.1']
    #allocation7 [shape = 'u8[16384]{0}', space=vmem, size = 0x4000, scoped, tag = 'input window, operand 3, single buffered']
    #allocation8 [shape = 'u8[16384]{0}', space=vmem, size = 0x4000, scoped, tag = 'input window, operand 5, single buffered']
    #allocation9 [shape = 's32[1]{0}', space=sflag, size = 0x4, scoped, tag = 'scoped memory for tpu_custom_call.1']
    #allocation10 [shape = 'u8[4096]{0}', space=vmem, size = 0x1000, scoped, tag = 'output window, operand 0, single buffered']
    %12 = vsyncpa [#allocation3], 0
    %13 = vsyncpa [#allocation6], 0
    %14 = vsyncpa [#allocation9], 0
    %15 = vsyncpa [#allocation4], 0
    // Predicated region
    $region2: #{tpu_custom_call.1} parent=1 // pred_check
      _
    $region3: #{tpu_custom_call.1} parent=1 // pred_check_branch
      %17 = sbr.rel (0) target = $region5
    $region4: #{tpu_custom_call.1} parent=1 // pred_region
      %s19 = ssub.s32 128, 128
      %20 = vsyncadd [#allocation3], %s19
      %s22 = sshll.u32 [#allocation2], 4
      %s23 = int_to_ptr.vmem [resolvable:$true] %s22
      %25 = dma.hbm_to_vmem [thread:$0]  %s0, 128, %s23, [#allocation3]
    $region5: #{tpu_custom_call.1} parent=1 // pred_fallthru
      _
    // Predicated region
    $region6: #{tpu_custom_call.1} parent=1 // pred_check
      _
    $region7: #{tpu_custom_call.1} parent=1 // pred_check_branch
      %27 = sbr.rel (0) target = $region9
    $region8: #{tpu_custom_call.1} parent=1 // pred_region
      %s29 = ssub.s32 256, 256
      %30 = vsyncadd [#allocation6], %s29
      %s31 = sshll.u32 [#allocation5], 4
      %s32 = int_to_ptr.vmem [resolvable:$true] %s31
      %37 = dma.hbm_to_vmem [thread:$0]  %s1, 256, %s32, [#allocation6], 128, 128, 8
    $region9: #{tpu_custom_call.1} parent=1 // pred_fallthru
      _
    // Predicated region
    $region10: #{tpu_custom_call.1} parent=1 // pred_check
      _
    $region11: #{tpu_custom_call.1} parent=1 // pred_check_branch
      %39 = sbr.rel (0) target = $region13
    $region12: #{tpu_custom_call.1} parent=1 // pred_region
      _
    $region13: #{tpu_custom_call.1} parent=1 // pred_fallthru
      _
    // Predicated region
    $region14: #{tpu_custom_call.1} parent=1 // pred_check
      _
    $region15: #{tpu_custom_call.1} parent=1 // pred_check_branch
      %41 = sbr.rel (0) target = $region17
    $region16: #{tpu_custom_call.1} parent=1 // pred_region
      %s43 = ssub.s32 512, 512
      %44 = vsyncadd [#allocation6], %s43
      %s45 = sshll.u32 [#allocation7], 4
      %s46 = int_to_ptr.vmem [resolvable:$true] %s45
      %51 = dma.hbm_to_vmem [thread:$0]  %s3, 512, %s46, [#allocation6], 128, 128, 8
    $region17: #{tpu_custom_call.1} parent=1 // pred_fallthru
      _
    // Predicated region
    $region18: #{tpu_custom_call.1} parent=1 // pred_check
      _
    $region19: #{tpu_custom_call.1} parent=1 // pred_check_branch
      %53 = sbr.rel (0) target = $region21
    $region20: #{tpu_custom_call.1} parent=1 // pred_region
      _
    $region21: #{tpu_custom_call.1} parent=1 // pred_fallthru
      _
    // Predicated region
    $region22: #{tpu_custom_call.1} parent=1 // pred_check
      _
    $region23: #{tpu_custom_call.1} parent=1 // pred_check_branch
      %55 = sbr.rel (0) target = $region25
    $region24: #{tpu_custom_call.1} parent=1 // pred_region
      %s57 = ssub.s32 512, 512
      %58 = vsyncadd [#allocation9], %s57
      %s59 = sshll.u32 [#allocation8], 4
      %s60 = int_to_ptr.vmem [resolvable:$true] %s59
      %65 = dma.hbm_to_vmem [thread:$0]  %s5, 512, %s60, [#allocation9], 128, 128, 8
    $region25: #{tpu_custom_call.1} parent=1 // pred_fallthru
      _
    // Predicated region
    $region26: #{tpu_custom_call.1} parent=1 // pred_check
      _
    $region27: #{tpu_custom_call.1} parent=1 // pred_check_branch
      %67 = sbr.rel (0) target = $region29
    $region28: #{tpu_custom_call.1} parent=1 // pred_region
      _
    $region29: #{tpu_custom_call.1} parent=1 // pred_fallthru
      _
    // Predicated region
    $region30: #{tpu_custom_call.1} parent=1 // pred_check
      _
    $region31: #{tpu_custom_call.1} parent=1 // pred_check_branch
      %69 = sbr.rel (0) target = $region33
    $region32: #{tpu_custom_call.1} parent=1 // pred_region
      %70 = dma.done [#allocation3], 128
    $region33: #{tpu_custom_call.1} parent=1 // pred_fallthru
      _
    // Predicated region
    $region34: #{tpu_custom_call.1} parent=1 // pred_check
      _
    $region35: #{tpu_custom_call.1} parent=1 // pred_check_branch
      %72 = sbr.rel (0) target = $region37
    $region36: #{tpu_custom_call.1} parent=1 // pred_region
      %73 = dma.done [#allocation6], 256
    $region37: #{tpu_custom_call.1} parent=1 // pred_fallthru
      _
    // Predicated region
    $region38: #{tpu_custom_call.1} parent=1 // pred_check
      _
    $region39: #{tpu_custom_call.1} parent=1 // pred_check_branch
      %75 = sbr.rel (0) target = $region41
    $region40: #{tpu_custom_call.1} parent=1 // pred_region
      %76 = dma.done [#allocation6], 512
    $region41: #{tpu_custom_call.1} parent=1 // pred_fallthru
      _
    // Predicated region
    $region42: #{tpu_custom_call.1} parent=1 // pred_check
      _
    $region43: #{tpu_custom_call.1} parent=1 // pred_check_branch
      %78 = sbr.rel (0) target = $region45
    $region44: #{tpu_custom_call.1} parent=1 // pred_region
      %79 = dma.done [#allocation9], 512
    $region45: #{tpu_custom_call.1} parent=1 // pred_fallthru
      _
    %v80 = vld [vmem:[#allocation2] sm:$0xff]
    %v81 = vld [vmem:[#allocation5] sm:$0xff]
    %v82 = vld [vmem:[#allocation5 + $0x8] sm:$0xff]
    %v83 = vld [vmem:[%s2] sm:$0x1]
    %v85 = vlaneseq
    %v86 = vshrl.u32 %v85, 7
    %v87 = vsub.s32 0, %v86
    %v88 = vrot.slane %v83, %v87
    %vm90 = vcmask 130048
    %v92 = vsel %vm90, %v80, 0
    %94 = vmatprep.subr.mxu0 0.0
    %95 = vmatpush1.msra.mxu0 0.0
    %96 = vmatprep.subr.mxu0 0.0
    %97 = vmatpush1.msra.mxu0 0.0
    %98 = vmatprep.subr.mxu0 0.0
    %99 = vmatpush1.msra.mxu0 0.0
    %100 = vmatprep.subr.mxu0 0.0
    %101 = vmatpush1.msra.mxu0 0.0
    %102 = vmatprep.subr.mxu0 0.0
    %103 = vmatpush1.msra.mxu0 0.0
    %104 = vmatprep.subr.mxu0 0.0
    %105 = vmatpush1.msra.mxu0 0.0
    %106 = vmatprep.subr.mxu0 0.0
    %107 = vmatpush1.msra.mxu0 0.0
    %108 = vmatprep.subr.mxu0 0.0
    %109 = vmatpush1.msra.mxu0 0.0
    %110 = vmatprep.subr.mxu0 0.0
    %111 = vmatpush1.msra.mxu0 0.0
    %112 = vmatprep.subr.mxu0 0.0
    %113 = vmatpush1.msra.mxu0 0.0
    %114 = vmatprep.subr.mxu0 0.0
    %115 = vmatpush1.msra.mxu0 0.0
    %116 = vmatprep.subr.mxu0 0.0
    %117 = vmatpush1.msra.mxu0 0.0
    %118 = vmatprep.subr.mxu0 0.0
    %119 = vmatpush1.msra.mxu0 0.0
    %120 = vmatprep.subr.mxu0 0.0
    %121 = vmatpush1.msra.mxu0 0.0
    %122 = vmatprep.subr.mxu0 0.0
    %123 = vmatpush1.msra.mxu0 %v82
    %124 = vmatprep.subr.mxu0 0.0
    %125 = vmatpush1.msra.mxu0 %v81
    %126 = vmatprep.subr.mxu0 0.0
    %127 = vmatpush2.msra.mxu0 0.0
    %128 = vmatprep.subr.mxu0 0.0
    %129 = vmatpush2.msra.mxu0 0.0
    %130 = vmatprep.subr.mxu0 0.0
    %131 = vmatpush2.msra.mxu0 0.0
    %132 = vmatprep.subr.mxu0 0.0
    %133 = vmatpush2.msra.mxu0 0.0
    %134 = vmatprep.subr.mxu0 0.0
    %135 = vmatpush2.msra.mxu0 0.0
    %136 = vmatprep.subr.mxu0 0.0
    %137 = vmatpush2.msra.mxu0 0.0
    %138 = vmatprep.subr.mxu0 0.0
    %139 = vmatpush2.msra.mxu0 0.0
    %140 = vmatprep.subr.mxu0 0.0
    %141 = vmatpush2.msra.mxu0 0.0
    %142 = vmatprep.subr.mxu0 0.0
    %143 = vmatpush2.msra.mxu0 0.0
    %144 = vmatprep.subr.mxu0 0.0
    %145 = vmatpush2.msra.mxu0 0.0
    %146 = vmatprep.subr.mxu0 0.0
    %147 = vmatpush2.msra.mxu0 0.0
    %148 = vmatprep.subr.mxu0 0.0
    %149 = vmatpush2.msra.mxu0 0.0
    %150 = vmatprep.subr.mxu0 0.0
    %151 = vmatpush2.msra.mxu0 0.0
    %152 = vmatprep.subr.mxu0 0.0
    %153 = vmatpush2.msra.mxu0 0.0
    %154 = vmatprep.subr.mxu0 0.0
    %155 = vmatpush2.msra.mxu0 0.0
    %156 = vmatprep.subr.mxu0 0.0
    %157 = vmatpush2.msra.mxu0 0.0
    %158 = vmatprep.mubr.f32.mxu0 0.0
    %159 = vmatmul.mubr.f32.gmra.mxu0 %v92
    %v160 = vpop.f32.mrf.mxu0
    %v161 = vadd.f32 %v88, %v160
    %v162 = vpop.f32.mrf.mxu0
    %163 = vdwg.mxu0
    %v164 = vtanh.pop %v161
    %v165 = vld [vmem:[#allocation7] sm:$0xff]
    %v166 = vld [vmem:[#allocation7 + $0x8] sm:$0xff]
    %v167 = vld [vmem:[#allocation7 + $0x10] sm:$0xff]
    %v168 = vld [vmem:[#allocation7 + $0x18] sm:$0xff]
    %v169 = vld [vmem:[%s4] sm:$0x1]
    %v171 = vlaneseq
    %v172 = vshrl.u32 %v171, 7
    %v173 = vsub.s32 0, %v172
    %v174 = vrot.slane %v169, %v173
    %vm176 = vcmask 261120
    %v178 = vsel %vm176, %v164, 0
    %180 = vmatprep.subr.mxu0 0.0
    %181 = vmatpush1.msra.mxu0 0.0
    %182 = vmatprep.subr.mxu0 0.0
    %183 = vmatpush1.msra.mxu0 0.0
    %184 = vmatprep.subr.mxu0 0.0
    %185 = vmatpush1.msra.mxu0 0.0
    %186 = vmatprep.subr.mxu0 0.0
    %187 = vmatpush1.msra.mxu0 0.0
    %188 = vmatprep.subr.mxu0 0.0
    %189 = vmatpush1.msra.mxu0 0.0
    %190 = vmatprep.subr.mxu0 0.0
    %191 = vmatpush1.msra.mxu0 0.0
    %192 = vmatprep.subr.mxu0 0.0
    %193 = vmatpush1.msra.mxu0 0.0
    %194 = vmatprep.subr.mxu0 0.0
    %195 = vmatpush1.msra.mxu0 0.0
    %196 = vmatprep.subr.mxu0 0.0
    %197 = vmatpush1.msra.mxu0 0.0
    %198 = vmatprep.subr.mxu0 0.0
    %199 = vmatpush1.msra.mxu0 0.0
    %200 = vmatprep.subr.mxu0 0.0
    %201 = vmatpush1.msra.mxu0 0.0
    %202 = vmatprep.subr.mxu0 0.0
    %203 = vmatpush1.msra.mxu0 0.0
    %204 = vmatprep.subr.mxu0 0.0
    %205 = vmatpush1.msra.mxu0 %v168
    %206 = vmatprep.subr.mxu0 0.0
    %207 = vmatpush1.msra.mxu0 %v167
    %208 = vmatprep.subr.mxu0 0.0
    %209 = vmatpush1.msra.mxu0 %v166
    %210 = vmatprep.subr.mxu0 0.0
    %211 = vmatpush1.msra.mxu0 %v165
    %212 = vmatprep.subr.mxu0 0.0
    %213 = vmatpush2.msra.mxu0 0.0
    %214 = vmatprep.subr.mxu0 0.0
    %215 = vmatpush2.msra.mxu0 0.0
    %216 = vmatprep.subr.mxu0 0.0
    %217 = vmatpush2.msra.mxu0 0.0
    %218 = vmatprep.subr.mxu0 0.0
    %219 = vmatpush2.msra.mxu0 0.0
    %220 = vmatprep.subr.mxu0 0.0
    %221 = vmatpush2.msra.mxu0 0.0
    %222 = vmatprep.subr.mxu0 0.0
    %223 = vmatpush2.msra.mxu0 0.0
    %224 = vmatprep.subr.mxu0 0.0
    %225 = vmatpush2.msra.mxu0 0.0
    %226 = vmatprep.subr.mxu0 0.0
    %227 = vmatpush2.msra.mxu0 0.0
    %228 = vmatprep.subr.mxu0 0.0
    %229 = vmatpush2.msra.mxu0 0.0
    %230 = vmatprep.subr.mxu0 0.0
    %231 = vmatpush2.msra.mxu0 0.0
    %232 = vmatprep.subr.mxu0 0.0
    %233 = vmatpush2.msra.mxu0 0.0
    %234 = vmatprep.subr.mxu0 0.0
    %235 = vmatpush2.msra.mxu0 0.0
    %236 = vmatprep.subr.mxu0 0.0
    %237 = vmatpush2.msra.mxu0 0.0
    %238 = vmatprep.subr.mxu0 0.0
    %239 = vmatpush2.msra.mxu0 0.0
    %240 = vmatprep.subr.mxu0 0.0
    %241 = vmatpush2.msra.mxu0 0.0
    %242 = vmatprep.subr.mxu0 0.0
    %243 = vmatpush2.msra.mxu0 0.0
    %244 = vmatprep.mubr.f32.mxu0 0.0
    %245 = vmatmul.mubr.f32.gmra.mxu0 %v178
    %v246 = vpop.f32.mrf.mxu0
    %v247 = vadd.f32 %v174, %v246
    %v248 = vpop.f32.mrf.mxu0
    %249 = vdwg.mxu0
    %v250 = vtanh.pop %v247
    %v251 = vld [vmem:[#allocation8] sm:$0xff]
    %v252 = vld [vmem:[#allocation8 + $0x8] sm:$0xff]
    %v253 = vld [vmem:[#allocation8 + $0x10] sm:$0xff]
    %v254 = vld [vmem:[#allocation8 + $0x18] sm:$0xff]
    %v255 = vld [vmem:[%s6] sm:$0x1]
    %v257 = vlaneseq
    %v258 = vshrl.u32 %v257, 7
    %v259 = vsub.s32 0, %v258
    %v260 = vrot.slane %v255, %v259
    %v263 = vsel %vm176, %v250, 0
    %265 = vmatprep.subr.mxu0 0.0
    %266 = vmatpush1.msra.mxu0 0.0
    %267 = vmatprep.subr.mxu0 0.0
    %268 = vmatpush1.msra.mxu0 0.0
    %269 = vmatprep.subr.mxu0 0.0
    %270 = vmatpush1.msra.mxu0 0.0
    %271 = vmatprep.subr.mxu0 0.0
    %272 = vmatpush1.msra.mxu0 0.0
    %273 = vmatprep.subr.mxu0 0.0
    %274 = vmatpush1.msra.mxu0 0.0
    %275 = vmatprep.subr.mxu0 0.0
    %276 = vmatpush1.msra.mxu0 0.0
    %277 = vmatprep.subr.mxu0 0.0
    %278 = vmatpush1.msra.mxu0 0.0
    %279 = vmatprep.subr.mxu0 0.0
    %280 = vmatpush1.msra.mxu0 0.0
    %281 = vmatprep.subr.mxu0 0.0
    %282 = vmatpush1.msra.mxu0 0.0
    %283 = vmatprep.subr.mxu0 0.0
    %284 = vmatpush1.msra.mxu0 0.0
    %285 = vmatprep.subr.mxu0 0.0
    %286 = vmatpush1.msra.mxu0 0.0
    %287 = vmatprep.subr.mxu0 0.0
    %288 = vmatpush1.msra.mxu0 0.0
    %289 = vmatprep.subr.mxu0 0.0
    %290 = vmatpush1.msra.mxu0 %v254
    %291 = vmatprep.subr.mxu0 0.0
    %292 = vmatpush1.msra.mxu0 %v253
    %293 = vmatprep.subr.mxu0 0.0
    %294 = vmatpush1.msra.mxu0 %v252
    %295 = vmatprep.subr.mxu0 0.0
    %296 = vmatpush1.msra.mxu0 %v251
    %297 = vmatprep.subr.mxu0 0.0
    %298 = vmatpush2.msra.mxu0 0.0
    %299 = vmatprep.subr.mxu0 0.0
    %300 = vmatpush2.msra.mxu0 0.0
    %301 = vmatprep.subr.mxu0 0.0
    %302 = vmatpush2.msra.mxu0 0.0
    %303 = vmatprep.subr.mxu0 0.0
    %304 = vmatpush2.msra.mxu0 0.0
    %305 = vmatprep.subr.mxu0 0.0
    %306 = vmatpush2.msra.mxu0 0.0
    %307 = vmatprep.subr.mxu0 0.0
    %308 = vmatpush2.msra.mxu0 0.0
    %309 = vmatprep.subr.mxu0 0.0
    %310 = vmatpush2.msra.mxu0 0.0
    %311 = vmatprep.subr.mxu0 0.0
    %312 = vmatpush2.msra.mxu0 0.0
    %313 = vmatprep.subr.mxu0 0.0
    %314 = vmatpush2.msra.mxu0 0.0
    %315 = vmatprep.subr.mxu0 0.0
    %316 = vmatpush2.msra.mxu0 0.0
    %317 = vmatprep.subr.mxu0 0.0
    %318 = vmatpush2.msra.mxu0 0.0
    %319 = vmatprep.subr.mxu0 0.0
    %320 = vmatpush2.msra.mxu0 0.0
    %321 = vmatprep.subr.mxu0 0.0
    %322 = vmatpush2.msra.mxu0 0.0
    %323 = vmatprep.subr.mxu0 0.0
    %324 = vmatpush2.msra.mxu0 0.0
    %325 = vmatprep.subr.mxu0 0.0
    %326 = vmatpush2.msra.mxu0 0.0
    %327 = vmatprep.subr.mxu0 0.0
    %328 = vmatpush2.msra.mxu0 0.0
    %329 = vmatprep.mubr.f32.mxu0 0.0
    %330 = vmatmul.mubr.f32.gmra.mxu0 %v263
    %v331 = vpop.f32.mrf.mxu0
    %v332 = vadd.f32 %v260, %v331
    %v333 = vpop.f32.mrf.mxu0
    %334 = vdwg.mxu0
    %335 = vst [vmem:[#allocation10] sm:$0xff] %v332
    // Predicated region
    $region46: #{tpu_custom_call.1} parent=1 // pred_check
      _
    $region47: #{tpu_custom_call.1} parent=1 // pred_check_branch
      %337 = sbr.rel (0) target = $region49
    $region48: #{tpu_custom_call.1} parent=1 // pred_region
      %s339 = ssub.s32 128, 128
      %340 = vsyncadd [#allocation4], %s339
      %s342 = sshll.u32 [#allocation10], 4
      %s343 = int_to_ptr.vmem [resolvable:$true] %s342
      %345 = dma.vmem_to_hbm [thread:$0]  %s343, 128, %s7, [#allocation4]
    $region49: #{tpu_custom_call.1} parent=1 // pred_fallthru
      _
    // Predicated region
    $region50: #{tpu_custom_call.1} parent=1 // pred_check
      _
    $region51: #{tpu_custom_call.1} parent=1 // pred_check_branch
      %347 = sbr.rel (0) target = $region53
    $region52: #{tpu_custom_call.1} parent=1 // pred_region
      %348 = dma.done [#allocation4], 128
    $region53: #{tpu_custom_call.1} parent=1 // pred_fallthru
      _
    %349 = vsyncpa [#allocation3], 1
    %350 = vsyncpa [#allocation6], 1
    %351 = vsyncpa [#allocation9], 1
    %352 = vsyncpa [#allocation4], 1

// kernel: tpu_custom_call.1
$region0: #{tpu_custom_call.1}
  #allocation0 [shape = 'u32[]', space=smem, size = 0x4, offset = 0x4, fixed_abs, tag = 'smem constant byte address 0x4 - core index']
  #allocation1 [shape = 'u32[144,128]{1,0:T(1,128)}', space=vmem, size = 0x12000, scoped, tag = 'internal scratch']
  %s0 = inlined_call_operand.hbm [shape: f32[8,16], index: 0, kind: input, shape index: {}]
  %s1 = inlined_call_operand.hbm [shape: f32[16,32], index: 1, kind: input, shape index: {}]
  %s2 = inlined_call_operand.vmem [shape: f32[1,32], index: 2, kind: input, shape index: {}]
  %s3 = inlined_call_operand.hbm [shape: f32[32,32], index: 3, kind: input, shape index: {}]
  %s4 = inlined_call_operand.vmem [shape: f32[1,32], index: 4, kind: input, shape index: {}]
  %s5 = inlined_call_operand.hbm [shape: f32[32,128], index: 5, kind: input, shape index: {}]
  %s6 = inlined_call_operand.vmem [shape: f32[1,128], index: 6, kind: input, shape index: {}]
  %s7 = inlined_call_operand.hbm [shape: f32[8,128], index: 7, kind: output, shape index: {}]
  %s8 = sld [smem:[#allocation0]]
  $region54: #{tpu_custom_call.1} parent=0
    _
  %s10 = ssub.s32 1, %s8
  %s11 = scalar_select 0, %s10, %s8
  $region1: #{tpu_custom_call.1} parent=0
    #allocation2 [shape = 'u8[4096]{0}', space=vmem, size = 0x1000, scoped, tag = 'input window, operand 0, single buffered']
    #allocation3 [shape = 's32[1]{0}', space=sflag, size = 0x4, scoped, tag = 'scoped memory for tpu_custom_call.1']
    #allocation4 [shape = 's32[1]{0}', space=sflag, size = 0x4, scoped, tag = 'scoped memory for tpu_custom_call.1']
    #allocation5 [shape = 'u8[8192]{0}', space=vmem, size = 0x2000, scoped, tag = 'input window, operand 1, single buffered']
    #allocation6 [shape = 's32[1]{0}', space=sflag, size = 0x4, scoped, tag = 'scoped memory for tpu_custom_call.1']
    #allocation7 [shape = 'u8[16384]{0}', space=vmem, size = 0x4000, scoped, tag = 'input window, operand 3, single buffered']
    #allocation8 [shape = 'u8[16384]{0}', space=vmem, size = 0x4000, scoped, tag = 'input window, operand 5, single buffered']
    #allocation9 [shape = 's32[1]{0}', space=sflag, size = 0x4, scoped, tag = 'scoped memory for tpu_custom_call.1']
    #allocation10 [shape = 'u8[4096]{0}', space=vmem, size = 0x1000, scoped, tag = 'output window, operand 0, single buffered']
    %12 = vsyncpa [#allocation3], 0
    %13 = vsyncpa [#allocation6], 0
    %14 = vsyncpa [#allocation9], 0
    %15 = vsyncpa [#allocation4], 0
    // Predicated region
    $region2: #{tpu_custom_call.1} parent=1 // pred_check
      _
    $region3: #{tpu_custom_call.1} parent=1 // pred_check_branch
      %17 = sbr.rel (0) target = $region5
    $region4: #{tpu_custom_call.1} parent=1 // pred_region
      %s19 = ssub.s32 128, 128
      %20 = vsyncadd [#allocation3], %s19
      %s22 = sshll.u32 [#allocation2], 4
      %s23 = int_to_ptr.vmem [resolvable:$true] %s22
      %25 = dma.hbm_to_vmem [thread:$0]  %s0, 128, %s23, [#allocation3]
    $region5: #{tpu_custom_call.1} parent=1 // pred_fallthru
      _
    // Predicated region
    $region6: #{tpu_custom_call.1} parent=1 // pred_check
      _
    $region7: #{tpu_custom_call.1} parent=1 // pred_check_branch
      %27 = sbr.rel (0) target = $region9
    $region8: #{tpu_custom_call.1} parent=1 // pred_region
      %s29 = ssub.s32 256, 256
      %30 = vsyncadd [#allocation6], %s29
      %s31 = sshll.u32 [#allocation5], 4
      %s32 = int_to_ptr.vmem [resolvable:$true] %s31
      %37 = dma.hbm_to_vmem [thread:$0]  %s1, 256, %s32, [#allocation6], 128, 128, 8
    $region9: #{tpu_custom_call.1} parent=1 // pred_fallthru
      _
    // Predicated region
    $region10: #{tpu_custom_call.1} parent=1 // pred_check
      _
    $region11: #{tpu_custom_call.1} parent=1 // pred_check_branch
      %39 = sbr.rel (0) target = $region13
    $region12: #{tpu_custom_call.1} parent=1 // pred_region
      _
    $region13: #{tpu_custom_call.1} parent=1 // pred_fallthru
      _
    // Predicated region
    $region14: #{tpu_custom_call.1} parent=1 // pred_check
      _
    $region15: #{tpu_custom_call.1} parent=1 // pred_check_branch
      %41 = sbr.rel (0) target = $region17
    $region16: #{tpu_custom_call.1} parent=1 // pred_region
      %s43 = ssub.s32 512, 512
      %44 = vsyncadd [#allocation6], %s43
      %s45 = sshll.u32 [#allocation7], 4
      %s46 = int_to_ptr.vmem [resolvable:$true] %s45
      %51 = dma.hbm_to_vmem [thread:$0]  %s3, 512, %s46, [#allocation6], 128, 128, 8
    $region17: #{tpu_custom_call.1} parent=1 // pred_fallthru
      _
    // Predicated region
    $region18: #{tpu_custom_call.1} parent=1 // pred_check
      _
    $region19: #{tpu_custom_call.1} parent=1 // pred_check_branch
      %53 = sbr.rel (0) target = $region21
    $region20: #{tpu_custom_call.1} parent=1 // pred_region
      _
    $region21: #{tpu_custom_call.1} parent=1 // pred_fallthru
      _
    // Predicated region
    $region22: #{tpu_custom_call.1} parent=1 // pred_check
      _
    $region23: #{tpu_custom_call.1} parent=1 // pred_check_branch
      %55 = sbr.rel (0) target = $region25
    $region24: #{tpu_custom_call.1} parent=1 // pred_region
      %s57 = ssub.s32 512, 512
      %58 = vsyncadd [#allocation9], %s57
      %s59 = sshll.u32 [#allocation8], 4
      %s60 = int_to_ptr.vmem [resolvable:$true] %s59
      %65 = dma.hbm_to_vmem [thread:$0]  %s5, 512, %s60, [#allocation9], 128, 128, 8
    $region25: #{tpu_custom_call.1} parent=1 // pred_fallthru
      _
    // Predicated region
    $region26: #{tpu_custom_call.1} parent=1 // pred_check
      _
    $region27: #{tpu_custom_call.1} parent=1 // pred_check_branch
      %67 = sbr.rel (0) target = $region29
    $region28: #{tpu_custom_call.1} parent=1 // pred_region
      _
    $region29: #{tpu_custom_call.1} parent=1 // pred_fallthru
      _
    // Predicated region
    $region30: #{tpu_custom_call.1} parent=1 // pred_check
      _
    $region31: #{tpu_custom_call.1} parent=1 // pred_check_branch
      %69 = sbr.rel (0) target = $region33
    $region32: #{tpu_custom_call.1} parent=1 // pred_region
      %70 = dma.done [#allocation3], 128
    $region33: #{tpu_custom_call.1} parent=1 // pred_fallthru
      _
    // Predicated region
    $region34: #{tpu_custom_call.1} parent=1 // pred_check
      _
    $region35: #{tpu_custom_call.1} parent=1 // pred_check_branch
      %72 = sbr.rel (0) target = $region37
    $region36: #{tpu_custom_call.1} parent=1 // pred_region
      %73 = dma.done [#allocation6], 256
    $region37: #{tpu_custom_call.1} parent=1 // pred_fallthru
      _
    // Predicated region
    $region38: #{tpu_custom_call.1} parent=1 // pred_check
      _
    $region39: #{tpu_custom_call.1} parent=1 // pred_check_branch
      %75 = sbr.rel (0) target = $region41
    $region40: #{tpu_custom_call.1} parent=1 // pred_region
      %76 = dma.done [#allocation6], 512
    $region41: #{tpu_custom_call.1} parent=1 // pred_fallthru
      _
    // Predicated region
    $region42: #{tpu_custom_call.1} parent=1 // pred_check
      _
    $region43: #{tpu_custom_call.1} parent=1 // pred_check_branch
      %78 = sbr.rel (0) target = $region45
    $region44: #{tpu_custom_call.1} parent=1 // pred_region
      %79 = dma.done [#allocation9], 512
    $region45: #{tpu_custom_call.1} parent=1 // pred_fallthru
      _
    %v80 = vld [vmem:[#allocation2] sm:$0xff]
    %v81 = vld [vmem:[#allocation5] sm:$0xff]
    %v82 = vld [vmem:[#allocation5 + $0x8] sm:$0xff]
    %v83 = vld [vmem:[%s2] sm:$0x1]
    %v85 = vlaneseq
    %v86 = vshrl.u32 %v85, 7
    %v87 = vsub.s32 0, %v86
    %v88 = vrot.slane %v83, %v87
    %vm90 = vcmask 130048
    %v92 = vsel %vm90, %v80, 0
    %94 = vmatprep.subr.mxu0 0.0
    %95 = vmatpush1.msra.mxu0 0.0
    %96 = vmatprep.subr.mxu0 0.0
    %97 = vmatpush1.msra.mxu0 0.0
    %98 = vmatprep.subr.mxu0 0.0
    %99 = vmatpush1.msra.mxu0 0.0
    %100 = vmatprep.subr.mxu0 0.0
    %101 = vmatpush1.msra.mxu0 0.0
    %102 = vmatprep.subr.mxu0 0.0
    %103 = vmatpush1.msra.mxu0 0.0
    %104 = vmatprep.subr.mxu0 0.0
    %105 = vmatpush1.msra.mxu0 0.0
    %106 = vmatprep.subr.mxu0 0.0
    %107 = vmatpush1.msra.mxu0 0.0
    %108 = vmatprep.subr.mxu0 0.0
    %109 = vmatpush1.msra.mxu0 0.0
    %110 = vmatprep.subr.mxu0 0.0
    %111 = vmatpush1.msra.mxu0 0.0
    %112 = vmatprep.subr.mxu0 0.0
    %113 = vmatpush1.msra.mxu0 0.0
    %114 = vmatprep.subr.mxu0 0.0
    %115 = vmatpush1.msra.mxu0 0.0
    %116 = vmatprep.subr.mxu0 0.0
    %117 = vmatpush1.msra.mxu0 0.0
    %118 = vmatprep.subr.mxu0 0.0
    %119 = vmatpush1.msra.mxu0 0.0
    %120 = vmatprep.subr.mxu0 0.0
    %121 = vmatpush1.msra.mxu0 0.0
    %122 = vmatprep.subr.mxu0 0.0
    %123 = vmatpush1.msra.mxu0 %v82
    %124 = vmatprep.subr.mxu0 0.0
    %125 = vmatpush1.msra.mxu0 %v81
    %126 = vmatprep.subr.mxu0 0.0
    %127 = vmatpush2.msra.mxu0 0.0
    %128 = vmatprep.subr.mxu0 0.0
    %129 = vmatpush2.msra.mxu0 0.0
    %130 = vmatprep.subr.mxu0 0.0
    %131 = vmatpush2.msra.mxu0 0.0
    %132 = vmatprep.subr.mxu0 0.0
    %133 = vmatpush2.msra.mxu0 0.0
    %134 = vmatprep.subr.mxu0 0.0
    %135 = vmatpush2.msra.mxu0 0.0
    %136 = vmatprep.subr.mxu0 0.0
    %137 = vmatpush2.msra.mxu0 0.0
    %138 = vmatprep.subr.mxu0 0.0
    %139 = vmatpush2.msra.mxu0 0.0
    %140 = vmatprep.subr.mxu0 0.0
    %141 = vmatpush2.msra.mxu0 0.0
    %142 = vmatprep.subr.mxu0 0.0
    %143 = vmatpush2.msra.mxu0 0.0
    %144 = vmatprep.subr.mxu0 0.0
    %145 = vmatpush2.msra.mxu0 0.0
    %146 = vmatprep.subr.mxu0 0.0
    %147 = vmatpush2.msra.mxu0 0.0
    %148 = vmatprep.subr.mxu0 0.0
    %149 = vmatpush2.msra.mxu0 0.0
    %150 = vmatprep.subr.mxu0 0.0
    %151 = vmatpush2.msra.mxu0 0.0
    %152 = vmatprep.subr.mxu0 0.0
    %153 = vmatpush2.msra.mxu0 0.0
    %154 = vmatprep.subr.mxu0 0.0
    %155 = vmatpush2.msra.mxu0 0.0
    %156 = vmatprep.subr.mxu0 0.0
    %157 = vmatpush2.msra.mxu0 0.0
    %158 = vmatprep.mubr.f32.mxu0 0.0
    %159 = vmatmul.mubr.f32.gmra.mxu0 %v92
    %v160 = vpop.f32.mrf.mxu0
    %v161 = vadd.f32 %v88, %v160
    %v162 = vpop.f32.mrf.mxu0
    %163 = vdwg.mxu0
    %v164 = vtanh.pop %v161
    %v165 = vld [vmem:[#allocation7] sm:$0xff]
    %v166 = vld [vmem:[#allocation7 + $0x8] sm:$0xff]
    %v167 = vld [vmem:[#allocation7 + $0x10] sm:$0xff]
    %v168 = vld [vmem:[#allocation7 + $0x18] sm:$0xff]
    %v169 = vld [vmem:[%s4] sm:$0x1]
    %v171 = vlaneseq
    %v172 = vshrl.u32 %v171, 7
    %v173 = vsub.s32 0, %v172
    %v174 = vrot.slane %v169, %v173
    %vm176 = vcmask 261120
    %v178 = vsel %vm176, %v164, 0
    %180 = vmatprep.subr.mxu0 0.0
    %181 = vmatpush1.msra.mxu0 0.0
    %182 = vmatprep.subr.mxu0 0.0
    %183 = vmatpush1.msra.mxu0 0.0
    %184 = vmatprep.subr.mxu0 0.0
    %185 = vmatpush1.msra.mxu0 0.0
    %186 = vmatprep.subr.mxu0 0.0
    %187 = vmatpush1.msra.mxu0 0.0
    %188 = vmatprep.subr.mxu0 0.0
    %189 = vmatpush1.msra.mxu0 0.0
    %190 = vmatprep.subr.mxu0 0.0
    %191 = vmatpush1.msra.mxu0 0.0
    %192 = vmatprep.subr.mxu0 0.0
    %193 = vmatpush1.msra.mxu0 0.0
    %194 = vmatprep.subr.mxu0 0.0
    %195 = vmatpush1.msra.mxu0 0.0
    %196 = vmatprep.subr.mxu0 0.0
    %197 = vmatpush1.msra.mxu0 0.0
    %198 = vmatprep.subr.mxu0 0.0
    %199 = vmatpush1.msra.mxu0 0.0
    %200 = vmatprep.subr.mxu0 0.0
    %201 = vmatpush1.msra.mxu0 0.0
    %202 = vmatprep.subr.mxu0 0.0
    %203 = vmatpush1.msra.mxu0 0.0
    %204 = vmatprep.subr.mxu0 0.0
    %205 = vmatpush1.msra.mxu0 %v168
    %206 = vmatprep.subr.mxu0 0.0
    %207 = vmatpush1.msra.mxu0 %v167
    %208 = vmatprep.subr.mxu0 0.0
    %209 = vmatpush1.msra.mxu0 %v166
    %210 = vmatprep.subr.mxu0 0.0
    %211 = vmatpush1.msra.mxu0 %v165
    %212 = vmatprep.subr.mxu0 0.0
    %213 = vmatpush2.msra.mxu0 0.0
    %214 = vmatprep.subr.mxu0 0.0
    %215 = vmatpush2.msra.mxu0 0.0
    %216 = vmatprep.subr.mxu0 0.0
    %217 = vmatpush2.msra.mxu0 0.0
    %218 = vmatprep.subr.mxu0 0.0
    %219 = vmatpush2.msra.mxu0 0.0
    %220 = vmatprep.subr.mxu0 0.0
    %221 = vmatpush2.msra.mxu0 0.0
    %222 = vmatprep.subr.mxu0 0.0
    %223 = vmatpush2.msra.mxu0 0.0
    %224 = vmatprep.subr.mxu0 0.0
    %225 = vmatpush2.msra.mxu0 0.0
    %226 = vmatprep.subr.mxu0 0.0
    %227 = vmatpush2.msra.mxu0 0.0
    %228 = vmatprep.subr.mxu0 0.0
    %229 = vmatpush2.msra.mxu0 0.0
    %230 = vmatprep.subr.mxu0 0.0
    %231 = vmatpush2.msra.mxu0 0.0
    %232 = vmatprep.subr.mxu0 0.0
    %233 = vmatpush2.msra.mxu0 0.0
    %234 = vmatprep.subr.mxu0 0.0
    %235 = vmatpush2.msra.mxu0 0.0
    %236 = vmatprep.subr.mxu0 0.0
    %237 = vmatpush2.msra.mxu0 0.0
    %238 = vmatprep.subr.mxu0 0.0
    %239 = vmatpush2.msra.mxu0 0.0
    %240 = vmatprep.subr.mxu0 0.0
    %241 = vmatpush2.msra.mxu0 0.0
    %242 = vmatprep.subr.mxu0 0.0
    %243 = vmatpush2.msra.mxu0 0.0
    %244 = vmatprep.mubr.f32.mxu0 0.0
    %245 = vmatmul.mubr.f32.gmra.mxu0 %v178
    %v246 = vpop.f32.mrf.mxu0
    %v247 = vadd.f32 %v174, %v246
    %v248 = vpop.f32.mrf.mxu0
    %249 = vdwg.mxu0
    %v250 = vtanh.pop %v247
    %v251 = vld [vmem:[#allocation8] sm:$0xff]
    %v252 = vld [vmem:[#allocation8 + $0x8] sm:$0xff]
    %v253 = vld [vmem:[#allocation8 + $0x10] sm:$0xff]
    %v254 = vld [vmem:[#allocation8 + $0x18] sm:$0xff]
    %v255 = vld [vmem:[%s6] sm:$0x1]
    %v257 = vlaneseq
    %v258 = vshrl.u32 %v257, 7
    %v259 = vsub.s32 0, %v258
    %v260 = vrot.slane %v255, %v259
    %v263 = vsel %vm176, %v250, 0
    %265 = vmatprep.subr.mxu0 0.0
    %266 = vmatpush1.msra.mxu0 0.0
    %267 = vmatprep.subr.mxu0 0.0
    %268 = vmatpush1.msra.mxu0 0.0
    %269 = vmatprep.subr.mxu0 0.0
    %270 = vmatpush1.msra.mxu0 0.0
    %271 = vmatprep.subr.mxu0 0.0
    %272 = vmatpush1.msra.mxu0 0.0
    %273 = vmatprep.subr.mxu0 0.0
    %274 = vmatpush1.msra.mxu0 0.0
    %275 = vmatprep.subr.mxu0 0.0
    %276 = vmatpush1.msra.mxu0 0.0
    %277 = vmatprep.subr.mxu0 0.0
    %278 = vmatpush1.msra.mxu0 0.0
    %279 = vmatprep.subr.mxu0 0.0
    %280 = vmatpush1.msra.mxu0 0.0
    %281 = vmatprep.subr.mxu0 0.0
    %282 = vmatpush1.msra.mxu0 0.0
    %283 = vmatprep.subr.mxu0 0.0
    %284 = vmatpush1.msra.mxu0 0.0
    %285 = vmatprep.subr.mxu0 0.0
    %286 = vmatpush1.msra.mxu0 0.0
    %287 = vmatprep.subr.mxu0 0.0
    %288 = vmatpush1.msra.mxu0 0.0
    %289 = vmatprep.subr.mxu0 0.0
    %290 = vmatpush1.msra.mxu0 %v254
    %291 = vmatprep.subr.mxu0 0.0
    %292 = vmatpush1.msra.mxu0 %v253
    %293 = vmatprep.subr.mxu0 0.0
    %294 = vmatpush1.msra.mxu0 %v252
    %295 = vmatprep.subr.mxu0 0.0
    %296 = vmatpush1.msra.mxu0 %v251
    %297 = vmatprep.subr.mxu0 0.0
    %298 = vmatpush2.msra.mxu0 0.0
    %299 = vmatprep.subr.mxu0 0.0
    %300 = vmatpush2.msra.mxu0 0.0
    %301 = vmatprep.subr.mxu0 0.0
    %302 = vmatpush2.msra.mxu0 0.0
    %303 = vmatprep.subr.mxu0 0.0
    %304 = vmatpush2.msra.mxu0 0.0
    %305 = vmatprep.subr.mxu0 0.0
    %306 = vmatpush2.msra.mxu0 0.0
    %307 = vmatprep.subr.mxu0 0.0
    %308 = vmatpush2.msra.mxu0 0.0
    %309 = vmatprep.subr.mxu0 0.0
    %310 = vmatpush2.msra.mxu0 0.0
    %311 = vmatprep.subr.mxu0 0.0
    %312 = vmatpush2.msra.mxu0 0.0
    %313 = vmatprep.subr.mxu0 0.0
    %314 = vmatpush2.msra.mxu0 0.0
    %315 = vmatprep.subr.mxu0 0.0
    %316 = vmatpush2.msra.mxu0 0.0
    %317 = vmatprep.subr.mxu0 0.0
    %318 = vmatpush2.msra.mxu0 0.0
    %319 = vmatprep.subr.mxu0 0.0
    %320 = vmatpush2.msra.mxu0 0.0
    %321 = vmatprep.subr.mxu0 0.0
    %322 = vmatpush2.msra.mxu0 0.0
    %323 = vmatprep.subr.mxu0 0.0
    %324 = vmatpush2.msra.mxu0 0.0
    %325 = vmatprep.subr.mxu0 0.0
    %326 = vmatpush2.msra.mxu0 0.0
    %327 = vmatprep.subr.mxu0 0.0
    %328 = vmatpush2.msra.mxu0 0.0
    %329 = vmatprep.mubr.f32.mxu0 0.0
    %330 = vmatmul.mubr.f32.gmra.mxu0 %v263
    %v331 = vpop.f32.mrf.mxu0
    %v332 = vadd.f32 %v260, %v331
    %v333 = vpop.f32.mrf.mxu0
    %334 = vdwg.mxu0
    %335 = vst [vmem:[#allocation10] sm:$0xff] %v332
    // Predicated region
    $region46: #{tpu_custom_call.1} parent=1 // pred_check
      _
    $region47: #{tpu_custom_call.1} parent=1 // pred_check_branch
      %337 = sbr.rel (0) target = $region49
    $region48: #{tpu_custom_call.1} parent=1 // pred_region
      %s339 = ssub.s32 128, 128
      %340 = vsyncadd [#allocation4], %s339
      %s342 = sshll.u32 [#allocation10], 4
      %s343 = int_to_ptr.vmem [resolvable:$true] %s342
      %345 = dma.vmem_to_hbm [thread:$0]  %s343, 128, %s7, [#allocation4]
    $region49: #{tpu_custom_call.1} parent=1 // pred_fallthru
      _
    // Predicated region
    $region50: #{tpu_custom_call.1} parent=1 // pred_check
      _
    $region51: #{tpu_custom_call.1} parent=1 // pred_check_branch
      %347 = sbr.rel (0) target = $region53
    $region52: #{tpu_custom_call.1} parent=1 // pred_region
      %348 = dma.done [#allocation4], 128
    $region53: #{tpu_custom_call.1} parent=1 // pred_fallthru
      _
    %349 = vsyncpa [#allocation3], 1
    %350 = vsyncpa [#allocation6], 1
    %351 = vsyncpa [#allocation9], 1
    %352 = vsyncpa [#allocation4], 1

</llo_original>
